<compile_context>
chip_gen: v6e
topology: v6e:2x2x1
jax: 0.10.0
libtpu: 0.0.40
codegen_flags: <defaults>
</compile_context>

<pallas_src>
import functools

import numpy as np
import jax
import jax.numpy as jnp
from jax import lax
from jax.experimental import pallas as pl
from jax.experimental.pallas import tpu as pltpu

_B_TILE = 128     # batch elements per lane tile
_TINY = 1e-30     # guard so reciprocals of exact zeros stay finite (0 * 1e30 = 0)


def _ctc_kernel(maxlen_ref,    # SMEM (num_btiles,) int32   per-tile max length
                lens_ref,      # VMEM (1, Bt) int32         per-element lengths
                y_ref,         # VMEM (T, S_pad, Bt) f32    per-CTC-state probs
                skip_f_ref,    # VMEM (S_pad, Bt) f32       forward  skip (s-2) indicator
                skip_b_ref,    # VMEM (S_pad, Bt) f32       backward skip (s+2) indicator
                out_ref,       # VMEM (8, Bt) f32           per-element loss (row 0)
                a_ref,         # VMEM scratch (T, S_pad, Bt) f32  alpha, time-major
                *, s_true):
    T, S_pad, Bt = y_ref.shape
    max_len = maxlen_ref[pl.program_id(0)]                  # scalar, <= T
    t_len = lens_ref[...]                                   # (1, Bt) int32
    s_idx = lax.broadcasted_iota(jnp.int32, (S_pad, 1), 0)  # states on sublanes
    skip_f = skip_f_ref[...]
    skip_b = skip_b_ref[...]
    tiny = jnp.float32(_TINY)

    def normalize(col):
        c = jnp.sum(col, axis=0, keepdims=True)                        # (1, Bt)
        return col * pl.reciprocal(jnp.maximum(c, tiny), approx=True)

    def band_mask(col, t):
        # Same (start, end) valid-state band as the reference, per batch lane.
        start = jnp.maximum(0, s_true - 2 * (t_len - t))               # (1, Bt)
        end = jnp.minimum(2 * t + 2, s_true)                           # scalar
        return jnp.where((s_idx >= start) & (s_idx < end), col, 0.0)

    # ---------------- alpha: forward DP, stored time-major ------------------
    y0 = y_ref[0]
    a0 = normalize(jnp.where(s_idx <= 1, y0, 0.0))
    a_ref[0] = a0

    def fwd_body(t, prev):
        yrow = y_ref[t]
        sh1 = jnp.where(s_idx >= 1, pltpu.roll(prev, shift=1, axis=0), 0.0)
        sh2 = pltpu.roll(prev, shift=2, axis=0)      # wrapped rows killed by skip_f
        newr = normalize(band_mask((prev + sh1 + skip_f * sh2) * yrow, t))
        a_ref[t] = newr
        return newr

    _ = lax.fori_loop(1, max_len, fwd_body, a0)

    # --------- beta DP (backward in time), fused with the loss term ---------
    # beta runs in forward state order: shifts go "up" (s+1, s+2); the per-lane
    # start column (tt == t_len - 1) is selected with a vectorized where.
    def bwd_body(i, carry):
        b_prev, loss_acc = carry
        tt = max_len - 1 - i
        yrow = y_ref[tt]
        up1 = pltpu.roll(b_prev, shift=S_pad - 1, axis=0)   # b_prev[s + 1]
        up2 = pltpu.roll(b_prev, shift=S_pad - 2, axis=0)   # b_prev[s + 2]
        rec = (b_prev + up1 + skip_b * up2) * yrow
        init = jnp.where(s_idx >= s_true - 2, yrow, 0.0)
        val = jnp.where(tt == t_len - 1, init, rec)
        val = normalize(band_mask(val, tt))
        # lh_t = sum_s alpha[s, t] * beta[s, t] / y[s, t]
        lh = jnp.sum(a_ref[tt] * val *
                     pl.reciprocal(jnp.maximum(yrow, tiny), approx=True),
                     axis=0, keepdims=True)                 # (1, Bt)
        contrib = jnp.where(tt < t_len, -jnp.log(jnp.maximum(lh, tiny)), 0.0)
        return val, loss_acc + contrib

    zero_row = jnp.zeros((S_pad, Bt), jnp.float32)
    zero_loss = jnp.zeros((1, Bt), jnp.float32)
    _, loss = lax.fori_loop(0, max_len, bwd_body, (zero_row, zero_loss))

    out_ref[...] = jnp.broadcast_to(loss, (8, Bt))


def ctc_loss_forward(preds, labels, lengths, blank_index=0):
    """Batch-mean CTC loss matching CTCLoss.forward (float32, forward only)."""
    preds = jnp.asarray(preds, jnp.float32)       # (B, C, T) class probabilities
    labels = jnp.asarray(labels, jnp.int32)       # (B, L)
    lengths = jnp.asarray(lengths, jnp.int32)     # (B,)
    B, C, T = preds.shape
    L = labels.shape[1]
    S = 2 * L + 1
    S_pad = ((S + 7) // 8) * 8                    # pad states to a sublane tile
    B_pad = ((B + _B_TILE - 1) // _B_TILE) * _B_TILE
    num_bt = B_pad // _B_TILE
    # TODO(synk): the backward()/softmax_grad path of the module is not
    # implemented (forward loss only); ragged label lists use the common L.

    s_arr = np.arange(S_pad)
    lab_pos = np.clip((s_arr - 1) // 2, 0, L - 1)
    is_odd = jnp.asarray((s_arr % 2 == 1) & (s_arr < S))

    # Per-state class probabilities y[t, s, b] = preds[b, class(s, b), t].
    state_cls = jnp.where(is_odd, labels[:, lab_pos], jnp.int32(blank_index))
    pt = jnp.transpose(preds, (0, 2, 1))                           # (B, T, C)
    y = jnp.take_along_axis(pt, state_cls[:, None, :], axis=2)     # (B, T, S_pad)
    y = jnp.where(jnp.asarray(s_arr < S), y, 1.0)                  # neutral pad states
    y = jnp.transpose(y, (1, 2, 0))                                # (T, S_pad, B)
    y = jnp.pad(y, ((0, 0), (0, 0), (0, B_pad - B)), constant_values=1.0)

    # Skip-transition indicators (forward: from s-2, backward: from s+2).
    lab_i = labels[:, lab_pos]                                     # (B, S_pad)
    skip_f = (jnp.asarray((s_arr % 2 == 1) & (s_arr >= 3) & (s_arr < S))
              & (lab_i != labels[:, np.maximum(lab_pos - 1, 0)]))
    skip_b = (jnp.asarray((s_arr % 2 == 1) & (s_arr + 3 < S))
              & (lab_i != labels[:, np.minimum(lab_pos + 1, L - 1)]))
    skip_f = jnp.pad(skip_f.astype(jnp.float32).T, ((0, 0), (0, B_pad - B)))
    skip_b = jnp.pad(skip_b.astype(jnp.float32).T, ((0, 0), (0, B_pad - B)))

    lens = jnp.clip(lengths, 0, T)                # guard OOB dynamic row slices
    lens = jnp.pad(lens, (0, B_pad - B))[None, :].astype(jnp.int32)   # (1, B_pad)
    maxlens = jnp.max(lens.reshape(num_bt, _B_TILE), axis=1).astype(jnp.int32)

    grid_spec = pltpu.PrefetchScalarGridSpec(
        num_scalar_prefetch=1,
        grid=(num_bt,),
        in_specs=[
            pl.BlockSpec((1, _B_TILE), lambda b, ml: (0, b)),             # lens
            pl.BlockSpec((T, S_pad, _B_TILE), lambda b, ml: (0, 0, b)),   # y
            pl.BlockSpec((S_pad, _B_TILE), lambda b, ml: (0, b)),         # skip_f
            pl.BlockSpec((S_pad, _B_TILE), lambda b, ml: (0, b)),         # skip_b
        ],
        out_specs=pl.BlockSpec((8, _B_TILE), lambda b, ml: (0, b)),
        scratch_shapes=[pltpu.VMEM((T, S_pad, _B_TILE), jnp.float32)],
    )
    # NOTE: at these sizes y + scratch are a few hundred KiB; for very large T
    # the y block and alpha scratch should be streamed in time chunks (v7x VMEM).
    out = pl.pallas_call(
        functools.partial(_ctc_kernel, s_true=S),
        out_shape=jax.ShapeDtypeStruct((8, B_pad), jnp.float32),
        grid_spec=grid_spec,
        compiler_params=pltpu.CompilerParams(
            dimension_semantics=("parallel",)),
    )(maxlens, lens, y, skip_f, skip_b)
    return jnp.mean(out[0, :B])


# ----------------------------------------------------------------------------
# Pure-numpy reference (same algorithm as the PyTorch module, fp64)
# ----------------------------------------------------------------------------
def _calc_alpha_ref(output, label, S, T, blank):
    a = np.zeros((S, T))
    a[0, 0] = output[blank, 0]
    a[1, 0] = output[label[0], 0]
    c = np.sum(a[:, 0])
    if c > 0:
        a[:, 0] = a[:, 0] / c
    for t in range(1, T):
        start = max(0, S - 2 * (T - t))
        end = min(2 * t + 2, S)
        for s in range(start, end):
            i = max(0, (s - 1) // 2)
            if s % 2 == 0:
                if s == 0:
                    a[s, t] = a[s, t - 1] * output[blank][t]
                else:
                    a[s, t] = (a[s, t - 1] + a[s - 1, t - 1]) * output[blank, t]
            elif s == 1 or label[i] == label[i - 1]:
                a[s, t] = (a[s, t - 1] + a[s - 1, t - 1]) * output[label[i], t]
            else:
                a[s, t] = (a[s, t - 1] + a[s - 1, t - 1]
                           + a[s - 2, t - 1]) * output[label[i], t]
        c = np.sum(a[start:end, t])
        if c > 0:
            a[start:end, t] = a[start:end, t] / c
    return a


def _ctc_loss_ref(output, label, length, blank):
    if output.shape[-1] == 0 or length == 0:
        return 0.0
    S, T = len(label) * 2 + 1, int(length)
    output = output[:, :T]
    a = _calc_alpha_ref(output, label, S, T, blank)
    b_ = _calc_alpha_ref(np.fliplr(output), label[::-1], S, T, blank)
    b = np.flipud(np.fliplr(b_))
    ab = a * b
    for s in range(S):
        if s % 2 == 0:
            ab[s, :] = ab[s, :] / output[blank, :]
        else:
            l = max(0, (s - 1) // 2)
            ab[s, :] = ab[s, :] / output[label[l], :]
    lh = np.sum(ab, axis=0)
    return -np.sum(np.log(lh))


if __name__ == "__main__":
    B, C, T, L = 2, 6, 16, 4
    blank = 0
    key = jax.random.PRNGKey(0)
    k1, k2 = jax.random.split(key)
    logits = jax.random.normal(k1, (B, C, T), dtype=jnp.float32)
    preds = jax.nn.softmax(logits, axis=1)           # class probabilities
    labels = jax.random.randint(k2, (B, L), 1, C, dtype=jnp.int32)
    lengths = jnp.array([T, 11], dtype=jnp.int32)

    loss = ctc_loss_forward(preds, labels, lengths, blank_index=blank)
    loss = jax.block_until_ready(loss)

    preds_np = np.asarray(preds, dtype=np.float64)
    labels_np = np.asarray(labels)
    lengths_np = np.asarray(lengths)
    ref = float(np.mean([_ctc_loss_ref(preds_np[i], labels_np[i],
                                       lengths_np[i], blank)
                         for i in range(B)]))
    got = float(loss)
    assert abs(got - ref) <= 5e-3 * abs(ref) + 1e-3, (got, ref)
    print("KERNEL_OK")
</pallas_src>

<mosaic_0001>
module attributes {stable_mosaic.version = 11 : i64} {
  func.func @_ctc_kernel(%arg0: i32, %arg1: memref<1xi32, #tpu.memory_space<smem>>, %arg2: memref<1x128xi32, #tpu.memory_space<vmem>>, %arg3: memref<16x16x128xf32, #tpu.memory_space<vmem>>, %arg4: memref<16x128xf32, #tpu.memory_space<vmem>>, %arg5: memref<16x128xf32, #tpu.memory_space<vmem>>, %arg6: memref<8x128xf32, #tpu.memory_space<vmem>>, %arg7: memref<16x16x128xf32, #tpu.memory_space<vmem>>) attributes {dimension_semantics = [#tpu.dimension_semantics<parallel>], iteration_bounds = array<i64: 1>, scalar_prefetch = 1 : i64, scratch_operands = 1 : i64, tpu.core_type = #tpu.core_type<tc>, window_params = [{transform_indices = @transform_0, window_bounds = array<i64: 1, 128>}, {transform_indices = @transform_1, window_bounds = array<i64: 16, 16, 128>}, {transform_indices = @transform_2, window_bounds = array<i64: 16, 128>}, {transform_indices = @transform_3, window_bounds = array<i64: 16, 128>}, {transform_indices = @transform_4, window_bounds = array<i64: 8, 128>}]} {
    %0 = arith.index_cast %arg0 : i32 to index
    %1 = memref.load %arg1[%0] : memref<1xi32, #tpu.memory_space<smem>>
    %c0 = arith.constant 0 : index
    %c0_0 = arith.constant 0 : index
    %2 = vector.load %arg2[%c0, %c0_0] : memref<1x128xi32, #tpu.memory_space<vmem>>, vector<1x128xi32>
    %3 = tpu.iota {dimensions = array<i32: 0>} : vector<16x1xi32>
    %c0_1 = arith.constant 0 : index
    %c0_2 = arith.constant 0 : index
    %4 = vector.load %arg4[%c0_1, %c0_2] : memref<16x128xf32, #tpu.memory_space<vmem>>, vector<16x128xf32>
    %c0_3 = arith.constant 0 : index
    %c0_4 = arith.constant 0 : index
    %5 = vector.load %arg5[%c0_3, %c0_4] : memref<16x128xf32, #tpu.memory_space<vmem>>, vector<16x128xf32>
    %c0_5 = arith.constant 0 : index
    %c0_6 = arith.constant 0 : index
    %c0_7 = arith.constant 0 : index
    %6 = vector.load %arg3[%c0_5, %c0_6, %c0_7] : memref<16x16x128xf32, #tpu.memory_space<vmem>>, vector<1x16x128xf32>
    %7 = vector.shape_cast %6 : vector<1x16x128xf32> to vector<16x128xf32>
    %c1_i32 = arith.constant 1 : i32
    %8 = vector.broadcast %c1_i32 : i32 to vector<16x1xi32>
    %9 = arith.cmpi sle, %3, %8 : vector<16x1xi32>
    %cst = arith.constant 0.000000e+00 : f32
    %10 = vector.shape_cast %9 : vector<16x1xi1> to vector<16x1xi1>
    %11 = vector.broadcast %10 : vector<16x1xi1> to vector<16x128xi1>
    %12 = vector.broadcast %cst : f32 to vector<16x128xf32>
    %13 = arith.select %11, %7, %12 : vector<16x128xi1>, vector<16x128xf32>
    %cst_8 = arith.constant dense<0.000000e+00> : vector<128xf32>
    %14 = vector.multi_reduction <add>, %13, %cst_8 [0] : vector<16x128xf32> to vector<128xf32>
    %15 = vector.shape_cast %14 : vector<128xf32> to vector<1x128xf32>
    %cst_9 = arith.constant 1.000000e-30 : f32
    %16 = vector.broadcast %cst_9 : f32 to vector<1x128xf32>
    %17 = arith.maximumf %15, %16 : vector<1x128xf32>
    %18 = tpu.reciprocal %17 {approx = true} : vector<1x128xf32> -> vector<1x128xf32>
    %19 = vector.broadcast %18 : vector<1x128xf32> to vector<16x128xf32>
    %20 = arith.mulf %13, %19 : vector<16x128xf32>
    %c0_10 = arith.constant 0 : index
    %c0_11 = arith.constant 0 : index
    %c0_12 = arith.constant 0 : index
    %21 = vector.load %arg7[%c0_10, %c0_11, %c0_12] : memref<16x16x128xf32, #tpu.memory_space<vmem>>, vector<1x16x128xf32>
    %22 = vector.shape_cast %21 : vector<1x16x128xf32> to vector<16x128xf32>
    %23 = vector.shape_cast %20 : vector<16x128xf32> to vector<1x16x128xf32>
    tpu.vector_store %arg7[%c0_10, %c0_11, %c0_12], %23 {strides = array<i32>} : memref<16x16x128xf32, #tpu.memory_space<vmem>>, vector<1x16x128xf32>,
    %cst_13 = arith.constant 1.000000e-30 : f32
    %c1_i32_14 = arith.constant 1 : i32
    %24 = arith.subi %1, %c1_i32_14 : i32
    %25 = arith.addi %c1_i32_14, %24 : i32
    %c1_i32_15 = arith.constant 1 : i32
    %26 = scf.for %arg8 = %c1_i32_14 to %25 step %c1_i32_15 iter_args(%arg9 = %20) -> (vector<16x128xf32>)  : i32 {
      %35 = arith.index_cast %arg8 : i32 to index
      %c0_22 = arith.constant 0 : index
      %c0_23 = arith.constant 0 : index
      %36 = vector.load %arg3[%35, %c0_22, %c0_23] : memref<16x16x128xf32, #tpu.memory_space<vmem>>, vector<1x16x128xf32>
      %37 = vector.shape_cast %36 : vector<1x16x128xf32> to vector<16x128xf32>
      %c1_i32_24 = arith.constant 1 : i32
      %38 = vector.broadcast %c1_i32_24 : i32 to vector<16x1xi32>
      %39 = arith.cmpi sge, %3, %38 : vector<16x1xi32>
      %c1_i32_25 = arith.constant 1 : i32
      %40 = tpu.dynamic_rotate %arg9 by %c1_i32_25 dim 0 : vector<16x128xf32>, i32 -> vector<16x128xf32>
      %cst_26 = arith.constant 0.000000e+00 : f32
      %41 = vector.shape_cast %39 : vector<16x1xi1> to vector<16x1xi1>
      %42 = vector.broadcast %41 : vector<16x1xi1> to vector<16x128xi1>
      %43 = vector.broadcast %cst_26 : f32 to vector<16x128xf32>
      %44 = arith.select %42, %40, %43 : vector<16x128xi1>, vector<16x128xf32>
      %c2_i32 = arith.constant 2 : i32
      %45 = tpu.dynamic_rotate %arg9 by %c2_i32 dim 0 : vector<16x128xf32>, i32 -> vector<16x128xf32>
      %46 = arith.addf %arg9, %44 : vector<16x128xf32>
      %47 = arith.mulf %4, %45 : vector<16x128xf32>
      %48 = arith.addf %46, %47 : vector<16x128xf32>
      %49 = arith.mulf %48, %37 : vector<16x128xf32>
      %50 = vector.broadcast %arg8 : i32 to vector<1x128xi32>
      %51 = arith.subi %2, %50 : vector<1x128xi32>
      %c2_i32_27 = arith.constant 2 : i32
      %52 = vector.broadcast %c2_i32_27 : i32 to vector<1x128xi32>
      %53 = arith.muli %52, %51 : vector<1x128xi32>
      %c9_i32 = arith.constant 9 : i32
      %54 = vector.broadcast %c9_i32 : i32 to vector<1x128xi32>
      %55 = arith.subi %54, %53 : vector<1x128xi32>
      %c0_i32_28 = arith.constant 0 : i32
      %56 = vector.broadcast %c0_i32_28 : i32 to vector<1x128xi32>
      %57 = arith.maxsi %56, %55 : vector<1x128xi32>
      %c2_i32_29 = arith.constant 2 : i32
      %58 = arith.muli %c2_i32_29, %arg8 : i32
      %c2_i32_30 = arith.constant 2 : i32
      %59 = arith.addi %58, %c2_i32_30 : i32
      %c9_i32_31 = arith.constant 9 : i32
      %60 = arith.minsi %59, %c9_i32_31 : i32
      %61 = vector.broadcast %3 : vector<16x1xi32> to vector<16x128xi32>
      %62 = vector.broadcast %57 : vector<1x128xi32> to vector<16x128xi32>
      %63 = arith.cmpi sge, %61, %62 : vector<16x128xi32>
      %64 = vector.broadcast %60 : i32 to vector<16x1xi32>
      %65 = arith.cmpi slt, %3, %64 : vector<16x1xi32>
      %66 = vector.broadcast %65 : vector<16x1xi1> to vector<16x128xi1>
      %67 = arith.andi %63, %66 : vector<16x128xi1>
      %cst_32 = arith.constant 0.000000e+00 : f32
      %68 = vector.broadcast %cst_32 : f32 to vector<16x128xf32>
      %69 = arith.select %67, %49, %68 : vector<16x128xi1>, vector<16x128xf32>
      %cst_33 = arith.constant dense<0.000000e+00> : vector<128xf32>
      %70 = vector.multi_reduction <add>, %69, %cst_33 [0] : vector<16x128xf32> to vector<128xf32>
      %71 = vector.shape_cast %70 : vector<128xf32> to vector<1x128xf32>
      %72 = vector.broadcast %cst_13 : f32 to vector<1x128xf32>
      %73 = arith.maximumf %71, %72 : vector<1x128xf32>
      %74 = tpu.reciprocal %73 {approx = true} : vector<1x128xf32> -> vector<1x128xf32>
      %75 = vector.broadcast %74 : vector<1x128xf32> to vector<16x128xf32>
      %76 = arith.mulf %69, %75 : vector<16x128xf32>
      %77 = arith.index_cast %arg8 : i32 to index
      %c0_34 = arith.constant 0 : index
      %c0_35 = arith.constant 0 : index
      %78 = vector.load %arg7[%77, %c0_34, %c0_35] : memref<16x16x128xf32, #tpu.memory_space<vmem>>, vector<1x16x128xf32>
      %79 = vector.shape_cast %78 : vector<1x16x128xf32> to vector<16x128xf32>
      %80 = vector.shape_cast %76 : vector<16x128xf32> to vector<1x16x128xf32>
      tpu.vector_store %arg7[%77, %c0_34, %c0_35], %80 {strides = array<i32>} : memref<16x16x128xf32, #tpu.memory_space<vmem>>, vector<1x16x128xf32>,
      scf.yield %76 : vector<16x128xf32>
    }
    %cst_16 = arith.constant 0.000000e+00 : f32
    %27 = vector.broadcast %cst_16 : f32 to vector<16x128xf32>
    %cst_17 = arith.constant 0.000000e+00 : f32
    %28 = vector.broadcast %cst_17 : f32 to vector<1x128xf32>
    %cst_18 = arith.constant 1.000000e-30 : f32
    %c0_i32 = arith.constant 0 : i32
    %29 = arith.subi %1, %c0_i32 : i32
    %30 = arith.addi %c0_i32, %29 : i32
    %c1_i32_19 = arith.constant 1 : i32
    %31:2 = scf.for %arg8 = %c0_i32 to %30 step %c1_i32_19 iter_args(%arg9 = %27, %arg10 = %28) -> (vector<16x128xf32>, vector<1x128xf32>)  : i32 {
      %c1_i32_22 = arith.constant 1 : i32
      %35 = arith.subi %1, %c1_i32_22 : i32
      %36 = arith.subi %35, %arg8 : i32
      %37 = arith.index_cast %36 : i32 to index
      %c0_23 = arith.constant 0 : index
      %c0_24 = arith.constant 0 : index
      %38 = vector.load %arg3[%37, %c0_23, %c0_24] : memref<16x16x128xf32, #tpu.memory_space<vmem>>, vector<1x16x128xf32>
      %39 = vector.shape_cast %38 : vector<1x16x128xf32> to vector<16x128xf32>
      %c15_i32 = arith.constant 15 : i32
      %40 = tpu.dynamic_rotate %arg9 by %c15_i32 dim 0 : vector<16x128xf32>, i32 -> vector<16x128xf32>
      %c14_i32 = arith.constant 14 : i32
      %41 = tpu.dynamic_rotate %arg9 by %c14_i32 dim 0 : vector<16x128xf32>, i32 -> vector<16x128xf32>
      %42 = arith.addf %arg9, %40 : vector<16x128xf32>
      %43 = arith.mulf %5, %41 : vector<16x128xf32>
      %44 = arith.addf %42, %43 : vector<16x128xf32>
      %45 = arith.mulf %44, %39 : vector<16x128xf32>
      %c7_i32 = arith.constant 7 : i32
      %46 = vector.broadcast %c7_i32 : i32 to vector<16x1xi32>
      %47 = arith.cmpi sge, %3, %46 : vector<16x1xi32>
      %cst_25 = arith.constant 0.000000e+00 : f32
      %48 = vector.shape_cast %47 : vector<16x1xi1> to vector<16x1xi1>
      %49 = vector.broadcast %48 : vector<16x1xi1> to vector<16x128xi1>
      %50 = vector.broadcast %cst_25 : f32 to vector<16x128xf32>
      %51 = arith.select %49, %39, %50 : vector<16x128xi1>, vector<16x128xf32>
      %c1_i32_26 = arith.constant 1 : i32
      %52 = vector.broadcast %c1_i32_26 : i32 to vector<1x128xi32>
      %53 = arith.subi %2, %52 : vector<1x128xi32>
      %54 = vector.broadcast %36 : i32 to vector<1x128xi32>
      %55 = arith.cmpi eq, %54, %53 : vector<1x128xi32>
      %56 = vector.shape_cast %55 : vector<1x128xi1> to vector<1x128xi1>
      %57 = vector.broadcast %56 : vector<1x128xi1> to vector<16x128xi1>
      %58 = arith.select %57, %51, %45 : vector<16x128xi1>, vector<16x128xf32>
      %59 = vector.broadcast %36 : i32 to vector<1x128xi32>
      %60 = arith.subi %2, %59 : vector<1x128xi32>
      %c2_i32 = arith.constant 2 : i32
      %61 = vector.broadcast %c2_i32 : i32 to vector<1x128xi32>
      %62 = arith.muli %61, %60 : vector<1x128xi32>
      %c9_i32 = arith.constant 9 : i32
      %63 = vector.broadcast %c9_i32 : i32 to vector<1x128xi32>
      %64 = arith.subi %63, %62 : vector<1x128xi32>
      %c0_i32_27 = arith.constant 0 : i32
      %65 = vector.broadcast %c0_i32_27 : i32 to vector<1x128xi32>
      %66 = arith.maxsi %65, %64 : vector<1x128xi32>
      %c2_i32_28 = arith.constant 2 : i32
      %67 = arith.muli %c2_i32_28, %36 : i32
      %c2_i32_29 = arith.constant 2 : i32
      %68 = arith.addi %67, %c2_i32_29 : i32
      %c9_i32_30 = arith.constant 9 : i32
      %69 = arith.minsi %68, %c9_i32_30 : i32
      %70 = vector.broadcast %3 : vector<16x1xi32> to vector<16x128xi32>
      %71 = vector.broadcast %66 : vector<1x128xi32> to vector<16x128xi32>
      %72 = arith.cmpi sge, %70, %71 : vector<16x128xi32>
      %73 = vector.broadcast %69 : i32 to vector<16x1xi32>
      %74 = arith.cmpi slt, %3, %73 : vector<16x1xi32>
      %75 = vector.broadcast %74 : vector<16x1xi1> to vector<16x128xi1>
      %76 = arith.andi %72, %75 : vector<16x128xi1>
      %cst_31 = arith.constant 0.000000e+00 : f32
      %77 = vector.broadcast %cst_31 : f32 to vector<16x128xf32>
      %78 = arith.select %76, %58, %77 : vector<16x128xi1>, vector<16x128xf32>
      %cst_32 = arith.constant dense<0.000000e+00> : vector<128xf32>
      %79 = vector.multi_reduction <add>, %78, %cst_32 [0] : vector<16x128xf32> to vector<128xf32>
      %80 = vector.shape_cast %79 : vector<128xf32> to vector<1x128xf32>
      %81 = vector.broadcast %cst_18 : f32 to vector<1x128xf32>
      %82 = arith.maximumf %80, %81 : vector<1x128xf32>
      %83 = tpu.reciprocal %82 {approx = true} : vector<1x128xf32> -> vector<1x128xf32>
      %84 = vector.broadcast %83 : vector<1x128xf32> to vector<16x128xf32>
      %85 = arith.mulf %78, %84 : vector<16x128xf32>
      %86 = arith.index_cast %36 : i32 to index
      %c0_33 = arith.constant 0 : index
      %c0_34 = arith.constant 0 : index
      %87 = vector.load %arg7[%86, %c0_33, %c0_34] : memref<16x16x128xf32, #tpu.memory_space<vmem>>, vector<1x16x128xf32>
      %88 = vector.shape_cast %87 : vector<1x16x128xf32> to vector<16x128xf32>
      %89 = arith.mulf %88, %85 : vector<16x128xf32>
      %90 = vector.broadcast %cst_18 : f32 to vector<16x128xf32>
      %91 = arith.maximumf %39, %90 : vector<16x128xf32>
      %92 = tpu.reciprocal %91 {approx = true} : vector<16x128xf32> -> vector<16x128xf32>
      %93 = arith.mulf %89, %92 : vector<16x128xf32>
      %cst_35 = arith.constant dense<0.000000e+00> : vector<128xf32>
      %94 = vector.multi_reduction <add>, %93, %cst_35 [0] : vector<16x128xf32> to vector<128xf32>
      %95 = vector.shape_cast %94 : vector<128xf32> to vector<1x128xf32>
      %96 = vector.broadcast %36 : i32 to vector<1x128xi32>
      %97 = arith.cmpi slt, %96, %2 : vector<1x128xi32>
      %98 = vector.broadcast %cst_18 : f32 to vector<1x128xf32>
      %99 = arith.maximumf %95, %98 : vector<1x128xf32>
      %100 = math.log %99 : vector<1x128xf32>
      %cst_36 = arith.constant 0.000000e+00 : f32
      %101 = vector.broadcast %cst_36 : f32 to vector<1x128xf32>
      %102 = arith.subf %101, %100 : vector<1x128xf32>
      %cst_37 = arith.constant 0.000000e+00 : f32
      %103 = vector.broadcast %cst_37 : f32 to vector<1x128xf32>
      %104 = arith.select %97, %102, %103 : vector<1x128xi1>, vector<1x128xf32>
      %105 = arith.addf %arg10, %104 : vector<1x128xf32>
      scf.yield %85, %105 : vector<16x128xf32>, vector<1x128xf32>
    }
    %32 = vector.shape_cast %31#1 : vector<1x128xf32> to vector<1x128xf32>
    %33 = vector.broadcast %32 : vector<1x128xf32> to vector<8x128xf32>
    %c0_20 = arith.constant 0 : index
    %c0_21 = arith.constant 0 : index
    %34 = vector.load %arg6[%c0_20, %c0_21] : memref<8x128xf32, #tpu.memory_space<vmem>>, vector<8x128xf32>
    tpu.vector_store %arg6[%c0_20, %c0_21], %33 {strides = array<i32>} : memref<8x128xf32, #tpu.memory_space<vmem>>, vector<8x128xf32>,
    return
  }
  func.func @transform_0(%arg0: i32, %arg1: memref<1xi32, #tpu.memory_space<smem>>) -> (i32, i32) {
    %c0_i32 = arith.constant 0 : i32
    %c0_i32_0 = arith.constant 0 : i32
    return %c0_i32, %arg0 : i32, i32
  }
  func.func @transform_1(%arg0: i32, %arg1: memref<1xi32, #tpu.memory_space<smem>>) -> (i32, i32, i32) {
    %c0_i32 = arith.constant 0 : i32
    %c0_i32_0 = arith.constant 0 : i32
    %c0_i32_1 = arith.constant 0 : i32
    return %c0_i32, %c0_i32_0, %arg0 : i32, i32, i32
  }
  func.func @transform_2(%arg0: i32, %arg1: memref<1xi32, #tpu.memory_space<smem>>) -> (i32, i32) {
    %c0_i32 = arith.constant 0 : i32
    %c0_i32_0 = arith.constant 0 : i32
    return %c0_i32, %arg0 : i32, i32
  }
  func.func @transform_3(%arg0: i32, %arg1: memref<1xi32, #tpu.memory_space<smem>>) -> (i32, i32) {
    %c0_i32 = arith.constant 0 : i32
    %c0_i32_0 = arith.constant 0 : i32
    return %c0_i32, %arg0 : i32, i32
  }
  func.func @transform_4(%arg0: i32, %arg1: memref<1xi32, #tpu.memory_space<smem>>) -> (i32, i32) {
    %c0_i32 = arith.constant 0 : i32
    %c0_i32_0 = arith.constant 0 : i32
    return %c0_i32, %arg0 : i32, i32
  }
}

</mosaic_0001>

<llo_original>
// kernel: tpu_custom_call.1
$region0: #{tpu_custom_call.1}
  #allocation0 [shape = 'u32[]', space=smem, size = 0x4, offset = 0x4, fixed_abs, tag = 'smem constant byte address 0x4 - core index']
  #allocation1 [shape = 'u32[144,128]{1,0:T(1,128)}', space=vmem, size = 0x12000, scoped, tag = 'internal scratch']
  #allocation2 [shape = 'f32[16,16,128]{2,1,0:T(8,128)}', space=vmem, size = 0x20000, scoped, tag = 'scratch operand']
  #allocation3 [shape = 's32[1]{0}', space=sflag, size = 0x4, scoped, tag = 'scoped memory for tpu_custom_call.1']
  #allocation4 [shape = 's32[1]{0:T(128)S(6)}', space=smem, size = 0x200, scoped, tag = 'prefetched SMEM operand 0']
  %s0 = inlined_call_operand.<no memory space> [shape: s32[1], index: 0, kind: input, shape index: {}]
  %s1 = inlined_call_operand.vmem [shape: s32[1,128], index: 1, kind: input, shape index: {}]
  %s2 = inlined_call_operand.hbm [shape: f32[16,16,128], index: 2, kind: input, shape index: {}]
  %s3 = inlined_call_operand.hbm [shape: f32[16,128], index: 3, kind: input, shape index: {}]
  %s4 = inlined_call_operand.hbm [shape: f32[16,128], index: 4, kind: input, shape index: {}]
  %s5 = inlined_call_operand.hbm [shape: f32[8,128], index: 5, kind: output, shape index: {}]
  %s6 = sld [smem:[#allocation0]]
  $region52: #{tpu_custom_call.1} parent=0
    _
  %s8 = ssub.s32 1, %s6
  %s9 = scalar_select 0, %s8, %s6
  %10 = sst [smem:[#allocation4]] %s0
  $region1: #{tpu_custom_call.1} parent=0
    #allocation5 [shape = 'u8[131072]{0}', space=vmem, size = 0x20000, scoped, tag = 'input window, operand 2, single buffered']
    #allocation6 [shape = 's32[1]{0}', space=sflag, size = 0x4, scoped, tag = 'scoped memory for tpu_custom_call.1']
    #allocation7 [shape = 's32[1]{0}', space=sflag, size = 0x4, scoped, tag = 'scoped memory for tpu_custom_call.1']
    #allocation8 [shape = 'u8[8192]{0}', space=vmem, size = 0x2000, scoped, tag = 'input window, operand 3, single buffered']
    #allocation9 [shape = 's32[1]{0}', space=sflag, size = 0x4, scoped, tag = 'scoped memory for tpu_custom_call.1']
    #allocation10 [shape = 'u8[8192]{0}', space=vmem, size = 0x2000, scoped, tag = 'input window, operand 4, single buffered']
    #allocation11 [shape = 'u8[4096]{0}', space=vmem, size = 0x1000, scoped, tag = 'output window, operand 0, single buffered']
    %11 = vsyncpa [#allocation6], 0
    %12 = vsyncpa [#allocation9], 0
    %13 = vsyncpa [#allocation7], 0
    // Predicated region
    $region2: #{tpu_custom_call.1} parent=1 // pred_check
      _
    $region3: #{tpu_custom_call.1} parent=1 // pred_check_branch
      %15 = sbr.rel (0) target = $region5
    $region4: #{tpu_custom_call.1} parent=1 // pred_region
      _
    $region5: #{tpu_custom_call.1} parent=1 // pred_fallthru
      _
    // Predicated region
    $region6: #{tpu_custom_call.1} parent=1 // pred_check
      _
    $region7: #{tpu_custom_call.1} parent=1 // pred_check_branch
      %17 = sbr.rel (0) target = $region9
    $region8: #{tpu_custom_call.1} parent=1 // pred_region
      %s19 = ssub.s32 4096, 4096
      %20 = vsyncadd [#allocation6], %s19
      %s21 = sshll.u32 [#allocation5], 4
      %s22 = int_to_ptr.vmem [resolvable:$true] %s21
      %27 = dma.hbm_to_vmem [thread:$0]  %s2, 4096, %s22, [#allocation6], 128, 128, 8
    $region9: #{tpu_custom_call.1} parent=1 // pred_fallthru
      _
    // Predicated region
    $region10: #{tpu_custom_call.1} parent=1 // pred_check
      _
    $region11: #{tpu_custom_call.1} parent=1 // pred_check_branch
      %29 = sbr.rel (0) target = $region13
    $region12: #{tpu_custom_call.1} parent=1 // pred_region
      %s31 = ssub.s32 256, 256
      %32 = vsyncadd [#allocation9], %s31
      %s33 = sshll.u32 [#allocation8], 4
      %s34 = int_to_ptr.vmem [resolvable:$true] %s33
      %39 = dma.hbm_to_vmem [thread:$0]  %s3, 256, %s34, [#allocation9], 128, 128, 8
    $region13: #{tpu_custom_call.1} parent=1 // pred_fallthru
      _
    // Predicated region
    $region14: #{tpu_custom_call.1} parent=1 // pred_check
      _
    $region15: #{tpu_custom_call.1} parent=1 // pred_check_branch
      %41 = sbr.rel (0) target = $region17
    $region16: #{tpu_custom_call.1} parent=1 // pred_region
      %s43 = ssub.s32 256, 256
      %44 = vsyncadd [#allocation9], %s43
      %s45 = sshll.u32 [#allocation10], 4
      %s46 = int_to_ptr.vmem [resolvable:$true] %s45
      %51 = dma.hbm_to_vmem [thread:$0]  %s4, 256, %s46, [#allocation9], 128, 128, 8
    $region17: #{tpu_custom_call.1} parent=1 // pred_fallthru
      _
    // Predicated region
    $region18: #{tpu_custom_call.1} parent=1 // pred_check
      _
    $region19: #{tpu_custom_call.1} parent=1 // pred_check_branch
      %53 = sbr.rel (0) target = $region21
    $region20: #{tpu_custom_call.1} parent=1 // pred_region
      %54 = dma.done [#allocation6], 4096
    $region21: #{tpu_custom_call.1} parent=1 // pred_fallthru
      _
    // Predicated region
    $region22: #{tpu_custom_call.1} parent=1 // pred_check
      _
    $region23: #{tpu_custom_call.1} parent=1 // pred_check_branch
      %56 = sbr.rel (0) target = $region25
    $region24: #{tpu_custom_call.1} parent=1 // pred_region
      %57 = dma.done [#allocation9], 256
    $region25: #{tpu_custom_call.1} parent=1 // pred_fallthru
      _
    // Predicated region
    $region26: #{tpu_custom_call.1} parent=1 // pred_check
      _
    $region27: #{tpu_custom_call.1} parent=1 // pred_check_branch
      %59 = sbr.rel (0) target = $region29
    $region28: #{tpu_custom_call.1} parent=1 // pred_region
      %60 = dma.done [#allocation9], 256
    $region29: #{tpu_custom_call.1} parent=1 // pred_fallthru
      _
    %s61 = sld [smem:[#allocation4]]
    %v62 = vld [vmem:[%s1] sm:$0x1]
    %v63 = vlaneseq
    %v64 = vshrl.u32 %v63, 7
    %v65 = vadd.s32 %v64, 8
    %v66 = vld [vmem:[#allocation8] sm:$0xff]
    %v67 = vld [vmem:[#allocation8 + $0x8] sm:$0xff]
    %v68 = vld [vmem:[#allocation10] sm:$0xff]
    %v69 = vld [vmem:[#allocation10 + $0x8] sm:$0xff]
    %v70 = vld [vmem:[#allocation5] sm:$0xff]
    %v71 = vld [vmem:[#allocation5 + $0x8] sm:$0xff]
    %vm72 = vcmp.le.s32.totalorder %v64, 1
    %vm73 = vcmp.le.s32.totalorder %v65, 1
    %v74 = vsel %vm72, 1, 0
    %v75 = vsel %vm73, 1, 0
    %vm76 = vcmp.eq.s32.totalorder %v74, 1
    %vm77 = vcmp.eq.s32.totalorder %v75, 1
    %v78 = vsel %vm76, %v70, 0.0
    %v79 = vsel %vm77, %v71, 0.0
    %v80 = vadd.f32 %v78, %v79
    %v81 = vrot.slane %v80, 4
    %v82 = vadd.f32 %v80, %v81
    %v83 = vrot.slane %v82, 2
    %v84 = vadd.f32 %v82, %v83
    %v85 = vrot.slane %v84, 1
    %v86 = vadd.f32 %v84, %v85
    %v87 = vmax.f32 %v86, 1e-30
    %v88 = vrcp.pop %v87
    %v89 = vmul.f32 %v78, %v88
    %v90 = vmul.f32 %v79, %v88
    %91 = vst [vmem:[#allocation2] sm:$0xff] %v89
    %92 = vst [vmem:[#allocation2 + $0x8] sm:$0xff] %v90
    // While loop
    $region30: #{tpu_custom_call.1} parent=1 // loop_pre_header
      _
    $region31: #{tpu_custom_call.1} parent=1 // loop_header
      %s94 = sphi 1, %s96
      %p95 = scmp.ge.s32.totalorder %s94, %s61
      %v99 = vphi %v89, %v167
      %v100 = vphi %v90, %v168
    $region32: #{tpu_custom_call.1} parent=1 // loop_header_branch
      %98 = sbr.rel (%p95) target = $region36
    $region33: #{tpu_custom_call.1} parent=1 // loop_body
      %s101 = smul.u32 %s94, 16
      %s102 = scalar_lea.vmem [#allocation5], %s101
      %v103 = vld [vmem:[%s102] sm:$0xff]
      %v104 = vld [vmem:[%s102 + $0x8] sm:$0xff]
      %vm105 = vcmp.ge.s32.totalorder %v64, 1
      %vm106 = vcmp.ge.s32.totalorder %v65, 1
      %v107 = vrot.slane %v99, 7
      %v108 = vrot.slane %v100, 7
      %vm109 = vcmp.lt.s32.totalorder %v64, 1
      %v110 = vsel %vm109, %v107, %v108
      %v111 = vsel %vm109, %v108, %v107
      %v112 = vsel %vm105, 1, 0
      %v113 = vsel %vm106, 1, 0
      %vm114 = vcmp.eq.s32.totalorder %v112, 1
      %vm115 = vcmp.eq.s32.totalorder %v113, 1
      %v116 = vsel %vm114, %v111, 0.0
      %v117 = vsel %vm115, %v110, 0.0
      %v118 = vrot.slane %v99, 6
      %v119 = vrot.slane %v100, 6
      %vm120 = vcmp.lt.s32.totalorder %v64, 2
      %v121 = vsel %vm120, %v118, %v119
      %v122 = vsel %vm120, %v119, %v118
      %v123 = vadd.f32 %v99, %v116
      %v124 = vadd.f32 %v100, %v117
      %v125 = vmul.f32 %v66, %v122
      %v126 = vmul.f32 %v67, %v121
      %v127 = vadd.f32 %v123, %v125
      %v128 = vadd.f32 %v124, %v126
      %v129 = vmul.f32 %v127, %v103
      %v130 = vmul.f32 %v128, %v104
      %v131 = vstv %s94
      %v132 = vsub.s32 %v62, %v131
      %v133 = vmul.u32 %v132, 2
      %v134 = vsub.s32 9, %v133
      %vm135 = vcmp.gt.s32.totalorder %v134, 0
      %v136 = vsel %vm135, %v134, 0
      %s137 = smul.u32 %s94, 2
      %s138 = sadd.s32 %s137, 2
      %p139 = scmp.lt.s32.totalorder %s138, 9
      %s140 = scalar_select %p139, %s138, 9
      %v141 = vlaneseq
      %v142 = vshrl.u32 %v141, 7
      %v143 = vsub.s32 0, %v142
      %v144 = vrot.slane %v136, %v143
      %vm145 = vcmp.ge.s32.totalorder %v64, %v144
      %vm146 = vcmp.ge.s32.totalorder %v65, %v144
      %v147 = vstv %s140
      %vm148 = vcmp.lt.s32.totalorder %v64, %v147
      %vm149 = vcmp.lt.s32.totalorder %v65, %v147
      %v150 = vsel %vm148, 1, 0
      %v151 = vsel %vm149, 1, 0
      %vm152 = vcmp.eq.s32.totalorder %v150, 1
      %vm153 = vcmp.eq.s32.totalorder %v151, 1
      %vm154 = vmand %vm145, %vm152
      %vm155 = vmand %vm146, %vm153
      %v156 = vsel %vm154, %v129, 0.0
      %v157 = vsel %vm155, %v130, 0.0
      %v158 = vadd.f32 %v156, %v157
      %v159 = vrot.slane %v158, 4
      %v160 = vadd.f32 %v158, %v159
      %v161 = vrot.slane %v160, 2
      %v162 = vadd.f32 %v160, %v161
      %v163 = vrot.slane %v162, 1
      %v164 = vadd.f32 %v162, %v163
      %v165 = vmax.f32 %v164, 1e-30
      %v166 = vrcp.pop %v165
      %v167 = vmul.f32 %v156, %v166
      %v168 = vmul.f32 %v157, %v166
      %s169 = scalar_lea.vmem [#allocation2], %s101
      %170 = vst [vmem:[%s169] sm:$0xff] %v167
      %171 = vst [vmem:[%s169 + $0x8] sm:$0xff] %v168
    $region34: #{tpu_custom_call.1} parent=1 // loop_footer
      %s96 = sadd.s32 %s94, 1
    $region35: #{tpu_custom_call.1} parent=1 // loop_footer_branch
      %93 = sbr.rel target = $region31
    $region36: #{tpu_custom_call.1} parent=1 // loop_exit
      _
    // While loop
    $region37: #{tpu_custom_call.1} parent=1 // loop_pre_header
      _
    $region38: #{tpu_custom_call.1} parent=1 // loop_header
      %s173 = sphi 0, %s175
      %p174 = scmp.ge.s32.totalorder %s173, %s61
      %v178 = vphi 0.0, %v259
      %v179 = vphi 0.0, %v260
      %v180 = vphi 0.0, %v285
    $region39: #{tpu_custom_call.1} parent=1 // loop_header_branch
      %177 = sbr.rel (%p174) target = $region43
    $region40: #{tpu_custom_call.1} parent=1 // loop_body
      %s181 = ssub.s32 %s61, 1
      %s182 = ssub.s32 %s181, %s173
      %s183 = smul.u32 %s182, 16
      %s184 = scalar_lea.vmem [#allocation5], %s183
      %v185 = vld [vmem:[%s184] sm:$0xff]
      %v186 = vld [vmem:[%s184 + $0x8] sm:$0xff]
      %v187 = vrot.slane %v178, 1
      %v188 = vrot.slane %v179, 1
      %vm189 = vcmp.lt.s32.totalorder %v64, 7
      %v190 = vsel %vm189, %v187, %v188
      %v191 = vsel %vm189, %v188, %v187
      %v192 = vrot.slane %v178, 2
      %v193 = vrot.slane %v179, 2
      %vm194 = vcmp.lt.s32.totalorder %v64, 6
      %v195 = vsel %vm194, %v192, %v193
      %v196 = vsel %vm194, %v193, %v192
      %v197 = vadd.f32 %v178, %v190
      %v198 = vadd.f32 %v179, %v191
      %v199 = vmul.f32 %v68, %v195
      %v200 = vmul.f32 %v69, %v196
      %v201 = vadd.f32 %v197, %v199
      %v202 = vadd.f32 %v198, %v200
      %v203 = vmul.f32 %v201, %v185
      %v204 = vmul.f32 %v202, %v186
      %vm205 = vcmp.ge.s32.totalorder %v64, 7
      %vm206 = vcmp.ge.s32.totalorder %v65, 7
      %v207 = vsel %vm205, 1, 0
      %v208 = vsel %vm206, 1, 0
      %vm209 = vcmp.eq.s32.totalorder %v207, 1
      %vm210 = vcmp.eq.s32.totalorder %v208, 1
      %v211 = vsel %vm209, %v185, 0.0
      %v212 = vsel %vm210, %v186, 0.0
      %v213 = vsub.s32 %v62, 1
      %v214 = vstv %s182
      %vm215 = vcmp.eq.s32.totalorder %v214, %v213
      %v216 = vsel %vm215, 1, 0
      %v217 = vlaneseq
      %v218 = vshrl.u32 %v217, 7
      %v219 = vsub.s32 0, %v218
      %v220 = vrot.slane %v216, %v219
      %vm221 = vcmp.eq.s32.totalorder %v220, 1
      %v222 = vsel %vm221, %v211, %v203
      %v223 = vsel %vm221, %v212, %v204
      %v224 = vsub.s32 %v62, %v214
      %v225 = vmul.u32 %v224, 2
      %v226 = vsub.s32 9, %v225
      %vm227 = vcmp.gt.s32.totalorder %v226, 0
      %v228 = vsel %vm227, %v226, 0
      %s229 = smul.u32 %s182, 2
      %s230 = sadd.s32 %s229, 2
      %p231 = scmp.lt.s32.totalorder %s230, 9
      %s232 = scalar_select %p231, %s230, 9
      %v233 = vlaneseq
      %v234 = vshrl.u32 %v233, 7
      %v235 = vsub.s32 0, %v234
      %v236 = vrot.slane %v228, %v235
      %vm237 = vcmp.ge.s32.totalorder %v64, %v236
      %vm238 = vcmp.ge.s32.totalorder %v65, %v236
      %v239 = vstv %s232
      %vm240 = vcmp.lt.s32.totalorder %v64, %v239
      %vm241 = vcmp.lt.s32.totalorder %v65, %v239
      %v242 = vsel %vm240, 1, 0
      %v243 = vsel %vm241, 1, 0
      %vm244 = vcmp.eq.s32.totalorder %v242, 1
      %vm245 = vcmp.eq.s32.totalorder %v243, 1
      %vm246 = vmand %vm237, %vm244
      %vm247 = vmand %vm238, %vm245
      %v248 = vsel %vm246, %v222, 0.0
      %v249 = vsel %vm247, %v223, 0.0
      %v250 = vadd.f32 %v248, %v249
      %v251 = vrot.slane %v250, 4
      %v252 = vadd.f32 %v250, %v251
      %v253 = vrot.slane %v252, 2
      %v254 = vadd.f32 %v252, %v253
      %v255 = vrot.slane %v254, 1
      %v256 = vadd.f32 %v254, %v255
      %v257 = vmax.f32 %v256, 1e-30
      %v258 = vrcp.pop %v257
      %v259 = vmul.f32 %v248, %v258
      %v260 = vmul.f32 %v249, %v258
      %s261 = scalar_lea.vmem [#allocation2], %s183
      %v262 = vld [vmem:[%s261] sm:$0xff]
      %v263 = vld [vmem:[%s261 + $0x8] sm:$0xff]
      %v264 = vmul.f32 %v262, %v259
      %v265 = vmul.f32 %v263, %v260
      %v266 = vmax.f32 %v185, 1e-30
      %v267 = vmax.f32 %v186, 1e-30
      %v268 = vrcp.pop %v266
      %v269 = vrcp.pop %v267
      %v270 = vmul.f32 %v264, %v268
      %v271 = vmul.f32 %v265, %v269
      %v272 = vadd.f32 %v270, %v271
      %v273 = vrot.slane %v272, 4
      %v274 = vadd.f32 %v272, %v273
      %v275 = vrot.slane %v274, 2
      %v276 = vadd.f32 %v274, %v275
      %v277 = vrot.slane %v276, 1
      %v278 = vadd.f32 %v276, %v277
      %vm279 = vcmp.lt.s32.totalorder %v214, %v62
      %v280 = vmax.f32 %v278, 1e-30
      %v281 = vlog2.pop %v280
      %v282 = vmul.f32 %v281, 0.6931472
      %v283 = vsub.f32 0.0, %v282
      %v284 = vsel %vm279, %v283, 0.0
      %v285 = vadd.f32 %v180, %v284
    $region41: #{tpu_custom_call.1} parent=1 // loop_footer
      %s175 = sadd.s32 %s173, 1
    $region42: #{tpu_custom_call.1} parent=1 // loop_footer_branch
      %172 = sbr.rel target = $region38
    $region43: #{tpu_custom_call.1} parent=1 // loop_exit
      _
    %v287 = vlaneseq
    %v288 = vshrl.u32 %v287, 7
    %v289 = vsub.s32 0, %v288
    %v290 = vrot.slane %v180, %v289
    %292 = vst [vmem:[#allocation11] sm:$0xff] %v290
    // Predicated region
    $region44: #{tpu_custom_call.1} parent=1 // pred_check
      _
    $region45: #{tpu_custom_call.1} parent=1 // pred_check_branch
      %294 = sbr.rel (0) target = $region47
    $region46: #{tpu_custom_call.1} parent=1 // pred_region
      %s296 = ssub.s32 128, 128
      %297 = vsyncadd [#allocation7], %s296
      %s299 = sshll.u32 [#allocation11], 4
      %s300 = int_to_ptr.vmem [resolvable:$true] %s299
      %302 = dma.vmem_to_hbm [thread:$0]  %s300, 128, %s5, [#allocation7]
    $region47: #{tpu_custom_call.1} parent=1 // pred_fallthru
      _
    // Predicated region
    $region48: #{tpu_custom_call.1} parent=1 // pred_check
      _
    $region49: #{tpu_custom_call.1} parent=1 // pred_check_branch
      %304 = sbr.rel (0) target = $region51
    $region50: #{tpu_custom_call.1} parent=1 // pred_region
      %305 = dma.done [#allocation7], 128
    $region51: #{tpu_custom_call.1} parent=1 // pred_fallthru
      _
    %306 = vsyncpa [#allocation6], 1
    %307 = vsyncpa [#allocation9], 1
    %308 = vsyncpa [#allocation7], 1

</llo_original>
